<compile_context>
chip_gen: v5e
topology: v5e:2x2
jax: 0.10.0
libtpu: 0.0.40
codegen_flags: <defaults>
</compile_context>

<pallas_src>
import jax
import jax.numpy as jnp
from jax.experimental import pallas as pl
from jax.experimental.pallas import tpu as pltpu

# Layer widths of the PyTorch nn.Sequential
DIMS = [8, 32, 64, 128, 64, 32, 8, 1]
NUM_LAYERS = len(DIMS) - 1  # 7


def _mlp_kernel(xT_ref, w_ref, b_ref, o_ref):
    """Full MLP forward on one (8, TB) feature-major batch tile.

    xT_ref: (8, TB) f32      -- x tile, transposed (features on sublanes)
    w_ref : (7, 128, 128) f32 -- packed weights, layer l at [l, :out, :in]
                                 (final layer stored as an (8, 1) column)
    b_ref : (7, 128, 1) f32   -- packed biases, layer l at [l, :out, 0]
    o_ref : (1, TB) f32       -- lane-dense output row
    """
    h = xT_ref[...]  # (8, TB) f32

    # Layers 1..6: h = relu(W_l @ h + b_l); bf16 MXU operands, f32 accumulate.
    for l in range(NUM_LAYERS - 1):
        din, dout = DIMS[l], DIMS[l + 1]
        w = w_ref[l, :dout, :din].astype(jnp.bfloat16)   # (dout, din)
        b = b_ref[l, :dout, :]                            # (dout, 1) f32
        h = jnp.dot(w, h.astype(jnp.bfloat16),
                    preferred_element_type=jnp.float32)   # (dout, TB) f32
        h = jnp.maximum(h + b, 0.0)                        # f32 VPU path

    # Final Linear(8 -> 1): weighted cross-sublane reduction on VPU/XLU
    # (no N=1 MXU matmul), result is already lane-dense.
    w7 = w_ref[NUM_LAYERS - 1, :DIMS[NUM_LAYERS - 1], :1]  # (8, 1) f32 column
    b7 = b_ref[NUM_LAYERS - 1, :1, :]                      # (1, 1) f32
    y = jnp.sum(h * w7, axis=0, keepdims=True) + b7        # (1, TB) f32
    o_ref[...] = y.astype(o_ref.dtype)


def pack_params(weights, biases):
    """Pack PyTorch-layout (out,in) weights and (out,) biases into two slabs."""
    w_packed = jnp.zeros((NUM_LAYERS, 128, 128), jnp.float32)
    b_packed = jnp.zeros((NUM_LAYERS, 128, 1), jnp.float32)
    for l in range(NUM_LAYERS - 1):
        w_packed = w_packed.at[l, :DIMS[l + 1], :DIMS[l]].set(weights[l])
    # Final layer stored as an (in, 1) column so the kernel can reduce over it.
    w_packed = w_packed.at[NUM_LAYERS - 1, :DIMS[NUM_LAYERS - 1], :1].set(
        weights[NUM_LAYERS - 1].T)
    for l in range(NUM_LAYERS):
        b_packed = b_packed.at[l, :DIMS[l + 1], 0].set(biases[l])
    return w_packed, b_packed


def text_classifier_forward(x, w_packed, b_packed, *, tb=256):
    """x: (B, 8) f32 -> (B, 1) f32."""
    B = x.shape[0]
    nb = pl.cdiv(B, tb)
    b_pad = nb * tb

    # Pad batch to a multiple of TB and present it feature-major (lane-dense).
    x_pad = jnp.pad(x, ((0, b_pad - B), (0, 0)))
    xT = x_pad.T  # (8, B_pad)

    out_row = pl.pallas_call(
        _mlp_kernel,
        out_shape=jax.ShapeDtypeStruct((1, b_pad), jnp.float32),
        grid=(nb,),
        in_specs=[
            # Batch tile: pipelined/double-buffered across the grid.
            pl.BlockSpec((DIMS[0], tb), lambda i: (0, i)),
            # Packed weights/biases: constant block index -> DMA'd once and
            # kept VMEM-resident for all grid steps.
            pl.BlockSpec((NUM_LAYERS, 128, 128), lambda i: (0, 0, 0)),
            pl.BlockSpec((NUM_LAYERS, 128, 1), lambda i: (0, 0, 0)),
        ],
        out_specs=pl.BlockSpec((1, tb), lambda i: (0, i)),
        compiler_params=pltpu.CompilerParams(
            dimension_semantics=("parallel",)),  # megacore sharding on v7x
    )(xT, w_packed, b_packed)

    return out_row[0, :B].reshape(B, 1)


def init_params(key):
    """Deterministic PyTorch-style (Kaiming-uniform-ish) init, (out,in) layout."""
    weights, biases = [], []
    for l in range(NUM_LAYERS):
        fan_in, fan_out = DIMS[l], DIMS[l + 1]
        key, kw, kb = jax.random.split(key, 3)
        bound = 1.0 / (fan_in ** 0.5)
        w = jax.random.uniform(kw, (fan_out, fan_in), jnp.float32, -bound, bound)
        b = jax.random.uniform(kb, (fan_out,), jnp.float32, -bound, bound)
        weights.append(w)
        biases.append(b)
    return weights, biases


def reference_forward(x, weights, biases):
    """Pure-JAX reference mirroring the kernel's bf16-matmul / f32 math."""
    h = x
    for l in range(NUM_LAYERS - 1):
        h = jnp.dot(h.astype(jnp.bfloat16), weights[l].T.astype(jnp.bfloat16),
                    preferred_element_type=jnp.float32)
        h = jnp.maximum(h + biases[l][None, :], 0.0)
    # Final layer in f32, elementwise (matches the kernel's reduction).
    w7 = weights[NUM_LAYERS - 1][0]  # (8,)
    y = jnp.sum(h * w7[None, :], axis=-1, keepdims=True) + biases[NUM_LAYERS - 1][None, :]
    return y


if __name__ == "__main__":
    key = jax.random.PRNGKey(0)
    key, kx = jax.random.split(key)

    B = 512  # small batch; TB=256 -> grid=(2,)
    x = jax.random.normal(kx, (B, DIMS[0]), jnp.float32)

    weights, biases = init_params(key)
    w_packed, b_packed = pack_params(weights, biases)

    out = text_classifier_forward(x, w_packed, b_packed, tb=256)
    out = jax.block_until_ready(out)

    ref = reference_forward(x, weights, biases)
    assert out.shape == (B, 1), out.shape
    assert jnp.allclose(out, ref, atol=5e-3, rtol=5e-3), (
        float(jnp.max(jnp.abs(out - ref))))

    print("KERNEL_OK")
</pallas_src>

<mosaic_0001>
module attributes {stable_mosaic.version = 11 : i64} {
  func.func @_mlp_kernel(%arg0: i32, %arg1: memref<8x256xf32, #tpu.memory_space<vmem>>, %arg2: memref<7x128x128xf32, #tpu.memory_space<vmem>>, %arg3: memref<7x128x1xf32, #tpu.memory_space<vmem>>, %arg4: memref<1x256xf32, #tpu.memory_space<vmem>>) attributes {dimension_semantics = [#tpu.dimension_semantics<parallel>], iteration_bounds = array<i64: 2>, scalar_prefetch = 0 : i64, scratch_operands = 0 : i64, tpu.core_type = #tpu.core_type<tc>, window_params = [{transform_indices = @transform_0, window_bounds = array<i64: 8, 256>}, {pipeline_mode = #tpu.pipeline_mode<synchronous>, transform_indices = @transform_1, window_bounds = array<i64: 7, 128, 128>}, {pipeline_mode = #tpu.pipeline_mode<synchronous>, transform_indices = @transform_2, window_bounds = array<i64: 7, 128, 1>}, {transform_indices = @transform_3, window_bounds = array<i64: 1, 256>}]} {
    %c0 = arith.constant 0 : index
    %c0_0 = arith.constant 0 : index
    %0 = vector.load %arg1[%c0, %c0_0] : memref<8x256xf32, #tpu.memory_space<vmem>>, vector<8x256xf32>
    %c0_1 = arith.constant 0 : index
    %c0_2 = arith.constant 0 : index
    %c0_3 = arith.constant 0 : index
    %1 = vector.load %arg2[%c0_1, %c0_2, %c0_3] : memref<7x128x128xf32, #tpu.memory_space<vmem>>, vector<1x32x8xf32>
    %2 = vector.shape_cast %1 : vector<1x32x8xf32> to vector<32x8xf32>
    %3 = arith.truncf %2 : vector<32x8xf32> to vector<32x8xbf16>
    %c0_4 = arith.constant 0 : index
    %c0_5 = arith.constant 0 : index
    %c0_6 = arith.constant 0 : index
    %4 = vector.load %arg3[%c0_4, %c0_5, %c0_6] : memref<7x128x1xf32, #tpu.memory_space<vmem>>, vector<1x32x1xf32>
    %5 = vector.shape_cast %4 : vector<1x32x1xf32> to vector<32x1xf32>
    %6 = arith.truncf %0 : vector<8x256xf32> to vector<8x256xbf16>
    %cst = arith.constant dense<0.000000e+00> : vector<32x256xf32>
    %7 = tpu.matmul %3, %6, %cst {dimension_numbers = #tpu.dot_dimension_numbers<[1], [0], [0], [1], [0, 0, 1, 1], [], []>} : vector<32x8xbf16>, vector<8x256xbf16>, vector<32x256xf32> -> vector<32x256xf32>
    %8 = vector.broadcast %5 : vector<32x1xf32> to vector<32x256xf32>
    %9 = arith.addf %7, %8 : vector<32x256xf32>
    %cst_7 = arith.constant 0.000000e+00 : f32
    %10 = vector.broadcast %cst_7 : f32 to vector<32x256xf32>
    %11 = arith.maximumf %9, %10 : vector<32x256xf32>
    %c1 = arith.constant 1 : index
    %c0_8 = arith.constant 0 : index
    %c0_9 = arith.constant 0 : index
    %12 = vector.load %arg2[%c1, %c0_8, %c0_9] : memref<7x128x128xf32, #tpu.memory_space<vmem>>, vector<1x64x32xf32>
    %13 = vector.shape_cast %12 : vector<1x64x32xf32> to vector<64x32xf32>
    %14 = arith.truncf %13 : vector<64x32xf32> to vector<64x32xbf16>
    %c1_10 = arith.constant 1 : index
    %c0_11 = arith.constant 0 : index
    %c0_12 = arith.constant 0 : index
    %15 = vector.load %arg3[%c1_10, %c0_11, %c0_12] : memref<7x128x1xf32, #tpu.memory_space<vmem>>, vector<1x64x1xf32>
    %16 = vector.shape_cast %15 : vector<1x64x1xf32> to vector<64x1xf32>
    %17 = arith.truncf %11 : vector<32x256xf32> to vector<32x256xbf16>
    %cst_13 = arith.constant dense<0.000000e+00> : vector<64x256xf32>
    %18 = tpu.matmul %14, %17, %cst_13 {dimension_numbers = #tpu.dot_dimension_numbers<[1], [0], [0], [1], [0, 0, 1, 1], [], []>} : vector<64x32xbf16>, vector<32x256xbf16>, vector<64x256xf32> -> vector<64x256xf32>
    %19 = vector.broadcast %16 : vector<64x1xf32> to vector<64x256xf32>
    %20 = arith.addf %18, %19 : vector<64x256xf32>
    %cst_14 = arith.constant 0.000000e+00 : f32
    %21 = vector.broadcast %cst_14 : f32 to vector<64x256xf32>
    %22 = arith.maximumf %20, %21 : vector<64x256xf32>
    %c2 = arith.constant 2 : index
    %c0_15 = arith.constant 0 : index
    %c0_16 = arith.constant 0 : index
    %23 = vector.load %arg2[%c2, %c0_15, %c0_16] : memref<7x128x128xf32, #tpu.memory_space<vmem>>, vector<1x128x64xf32>
    %24 = vector.shape_cast %23 : vector<1x128x64xf32> to vector<128x64xf32>
    %25 = arith.truncf %24 : vector<128x64xf32> to vector<128x64xbf16>
    %c2_17 = arith.constant 2 : index
    %c0_18 = arith.constant 0 : index
    %c0_19 = arith.constant 0 : index
    %26 = vector.load %arg3[%c2_17, %c0_18, %c0_19] : memref<7x128x1xf32, #tpu.memory_space<vmem>>, vector<1x128x1xf32>
    %27 = vector.shape_cast %26 : vector<1x128x1xf32> to vector<128x1xf32>
    %28 = arith.truncf %22 : vector<64x256xf32> to vector<64x256xbf16>
    %cst_20 = arith.constant dense<0.000000e+00> : vector<128x256xf32>
    %29 = tpu.matmul %25, %28, %cst_20 {dimension_numbers = #tpu.dot_dimension_numbers<[1], [0], [0], [1], [0, 0, 1, 1], [], []>} : vector<128x64xbf16>, vector<64x256xbf16>, vector<128x256xf32> -> vector<128x256xf32>
    %30 = vector.broadcast %27 : vector<128x1xf32> to vector<128x256xf32>
    %31 = arith.addf %29, %30 : vector<128x256xf32>
    %cst_21 = arith.constant 0.000000e+00 : f32
    %32 = vector.broadcast %cst_21 : f32 to vector<128x256xf32>
    %33 = arith.maximumf %31, %32 : vector<128x256xf32>
    %c3 = arith.constant 3 : index
    %c0_22 = arith.constant 0 : index
    %c0_23 = arith.constant 0 : index
    %34 = vector.load %arg2[%c3, %c0_22, %c0_23] : memref<7x128x128xf32, #tpu.memory_space<vmem>>, vector<1x64x128xf32>
    %35 = vector.shape_cast %34 : vector<1x64x128xf32> to vector<64x128xf32>
    %36 = arith.truncf %35 : vector<64x128xf32> to vector<64x128xbf16>
    %c3_24 = arith.constant 3 : index
    %c0_25 = arith.constant 0 : index
    %c0_26 = arith.constant 0 : index
    %37 = vector.load %arg3[%c3_24, %c0_25, %c0_26] : memref<7x128x1xf32, #tpu.memory_space<vmem>>, vector<1x64x1xf32>
    %38 = vector.shape_cast %37 : vector<1x64x1xf32> to vector<64x1xf32>
    %39 = arith.truncf %33 : vector<128x256xf32> to vector<128x256xbf16>
    %cst_27 = arith.constant dense<0.000000e+00> : vector<64x256xf32>
    %40 = tpu.matmul %36, %39, %cst_27 {dimension_numbers = #tpu.dot_dimension_numbers<[1], [0], [0], [1], [0, 0, 1, 1], [], []>} : vector<64x128xbf16>, vector<128x256xbf16>, vector<64x256xf32> -> vector<64x256xf32>
    %41 = vector.broadcast %38 : vector<64x1xf32> to vector<64x256xf32>
    %42 = arith.addf %40, %41 : vector<64x256xf32>
    %cst_28 = arith.constant 0.000000e+00 : f32
    %43 = vector.broadcast %cst_28 : f32 to vector<64x256xf32>
    %44 = arith.maximumf %42, %43 : vector<64x256xf32>
    %c4 = arith.constant 4 : index
    %c0_29 = arith.constant 0 : index
    %c0_30 = arith.constant 0 : index
    %45 = vector.load %arg2[%c4, %c0_29, %c0_30] : memref<7x128x128xf32, #tpu.memory_space<vmem>>, vector<1x32x64xf32>
    %46 = vector.shape_cast %45 : vector<1x32x64xf32> to vector<32x64xf32>
    %47 = arith.truncf %46 : vector<32x64xf32> to vector<32x64xbf16>
    %c4_31 = arith.constant 4 : index
    %c0_32 = arith.constant 0 : index
    %c0_33 = arith.constant 0 : index
    %48 = vector.load %arg3[%c4_31, %c0_32, %c0_33] : memref<7x128x1xf32, #tpu.memory_space<vmem>>, vector<1x32x1xf32>
    %49 = vector.shape_cast %48 : vector<1x32x1xf32> to vector<32x1xf32>
    %50 = arith.truncf %44 : vector<64x256xf32> to vector<64x256xbf16>
    %cst_34 = arith.constant dense<0.000000e+00> : vector<32x256xf32>
    %51 = tpu.matmul %47, %50, %cst_34 {dimension_numbers = #tpu.dot_dimension_numbers<[1], [0], [0], [1], [0, 0, 1, 1], [], []>} : vector<32x64xbf16>, vector<64x256xbf16>, vector<32x256xf32> -> vector<32x256xf32>
    %52 = vector.broadcast %49 : vector<32x1xf32> to vector<32x256xf32>
    %53 = arith.addf %51, %52 : vector<32x256xf32>
    %cst_35 = arith.constant 0.000000e+00 : f32
    %54 = vector.broadcast %cst_35 : f32 to vector<32x256xf32>
    %55 = arith.maximumf %53, %54 : vector<32x256xf32>
    %c5 = arith.constant 5 : index
    %c0_36 = arith.constant 0 : index
    %c0_37 = arith.constant 0 : index
    %56 = vector.load %arg2[%c5, %c0_36, %c0_37] : memref<7x128x128xf32, #tpu.memory_space<vmem>>, vector<1x8x32xf32>
    %57 = vector.shape_cast %56 : vector<1x8x32xf32> to vector<8x32xf32>
    %58 = arith.truncf %57 : vector<8x32xf32> to vector<8x32xbf16>
    %c5_38 = arith.constant 5 : index
    %c0_39 = arith.constant 0 : index
    %c0_40 = arith.constant 0 : index
    %59 = vector.load %arg3[%c5_38, %c0_39, %c0_40] : memref<7x128x1xf32, #tpu.memory_space<vmem>>, vector<1x8x1xf32>
    %60 = vector.shape_cast %59 : vector<1x8x1xf32> to vector<8x1xf32>
    %61 = arith.truncf %55 : vector<32x256xf32> to vector<32x256xbf16>
    %cst_41 = arith.constant dense<0.000000e+00> : vector<8x256xf32>
    %62 = tpu.matmul %58, %61, %cst_41 {dimension_numbers = #tpu.dot_dimension_numbers<[1], [0], [0], [1], [0, 0, 1, 1], [], []>} : vector<8x32xbf16>, vector<32x256xbf16>, vector<8x256xf32> -> vector<8x256xf32>
    %63 = vector.broadcast %60 : vector<8x1xf32> to vector<8x256xf32>
    %64 = arith.addf %62, %63 : vector<8x256xf32>
    %cst_42 = arith.constant 0.000000e+00 : f32
    %65 = vector.broadcast %cst_42 : f32 to vector<8x256xf32>
    %66 = arith.maximumf %64, %65 : vector<8x256xf32>
    %c6 = arith.constant 6 : index
    %c0_43 = arith.constant 0 : index
    %c0_44 = arith.constant 0 : index
    %67 = vector.load %arg2[%c6, %c0_43, %c0_44] : memref<7x128x128xf32, #tpu.memory_space<vmem>>, vector<1x8x1xf32>
    %68 = vector.shape_cast %67 : vector<1x8x1xf32> to vector<8x1xf32>
    %c6_45 = arith.constant 6 : index
    %c0_46 = arith.constant 0 : index
    %c0_47 = arith.constant 0 : index
    %69 = vector.load %arg3[%c6_45, %c0_46, %c0_47] : memref<7x128x1xf32, #tpu.memory_space<vmem>>, vector<1x1x1xf32>
    %70 = vector.shape_cast %69 : vector<1x1x1xf32> to vector<1x1xf32>
    %71 = vector.broadcast %68 : vector<8x1xf32> to vector<8x256xf32>
    %72 = arith.mulf %66, %71 : vector<8x256xf32>
    %cst_48 = arith.constant dense<0.000000e+00> : vector<256xf32>
    %73 = vector.multi_reduction <add>, %72, %cst_48 [0] : vector<8x256xf32> to vector<256xf32>
    %74 = vector.shape_cast %73 : vector<256xf32> to vector<1x256xf32>
    %75 = vector.broadcast %70 : vector<1x1xf32> to vector<1x256xf32>
    %76 = arith.addf %74, %75 : vector<1x256xf32>
    %c0_49 = arith.constant 0 : index
    %c0_50 = arith.constant 0 : index
    %77 = vector.load %arg4[%c0_49, %c0_50] : memref<1x256xf32, #tpu.memory_space<vmem>>, vector<1x256xf32>
    tpu.vector_store %arg4[%c0_49, %c0_50], %76 {strides = array<i32>} : memref<1x256xf32, #tpu.memory_space<vmem>>, vector<1x256xf32>,
    return
  }
  func.func @transform_0(%arg0: i32) -> (i32, i32) {
    %c0_i32 = arith.constant 0 : i32
    %c0_i32_0 = arith.constant 0 : i32
    return %c0_i32, %arg0 : i32, i32
  }
  func.func @transform_1(%arg0: i32) -> (i32, i32, i32) {
    %c0_i32 = arith.constant 0 : i32
    %c0_i32_0 = arith.constant 0 : i32
    %c0_i32_1 = arith.constant 0 : i32
    %c0_i32_2 = arith.constant 0 : i32
    return %c0_i32, %c0_i32_0, %c0_i32_1 : i32, i32, i32
  }
  func.func @transform_2(%arg0: i32) -> (i32, i32, i32) {
    %c0_i32 = arith.constant 0 : i32
    %c0_i32_0 = arith.constant 0 : i32
    %c0_i32_1 = arith.constant 0 : i32
    %c0_i32_2 = arith.constant 0 : i32
    return %c0_i32, %c0_i32_0, %c0_i32_1 : i32, i32, i32
  }
  func.func @transform_3(%arg0: i32) -> (i32, i32) {
    %c0_i32 = arith.constant 0 : i32
    %c0_i32_0 = arith.constant 0 : i32
    return %c0_i32, %arg0 : i32, i32
  }
}

</mosaic_0001>

<llo_original>
// kernel: tpu_custom_call.1
$region0: #{tpu_custom_call.1}
  #allocation0 [shape = 'u32[]', space=smem, size = 0x4, offset = 0x4, fixed_abs, tag = 'smem constant byte address 0x4 - core index']
  #allocation1 [shape = 'u32[72,128]{1,0:T(1,128)}', space=vmem, size = 0x9000, scoped, tag = 'internal scratch']
  %s0 = inlined_call_operand.hbm [shape: f32[8,512], index: 0, kind: input, shape index: {}]
  %s1 = inlined_call_operand.vmem [shape: f32[7,128,128], index: 1, kind: input, shape index: {}]
  %s2 = inlined_call_operand.vmem [shape: f32[7,128,1], index: 2, kind: input, shape index: {}]
  %s3 = inlined_call_operand.hbm [shape: f32[1,512], index: 3, kind: output, shape index: {}]
  %s4 = sld [smem:[#allocation0]]
  $region49: #{tpu_custom_call.1} parent=0
    _
  %s6 = ssub.s32 1, %s4
  %s7 = scalar_select 0, %s6, %s4
  $region1: #{tpu_custom_call.1} parent=0
    #allocation2 [shape = 'u8[16384]{0}', space=vmem, size = 0x4000, scoped, tag = 'input window, operand 0']
    #allocation3 [shape = 's32[2]{0}', space=sflag, size = 0x8, scoped, tag = 'scoped memory for tpu_custom_call.1']
    #allocation4 [shape = 's32[2]{0}', space=sflag, size = 0x8, scoped, tag = 'scoped memory for tpu_custom_call.1']
    #allocation5 [shape = 'u8[2048]{0}', space=vmem, size = 0x800, scoped, tag = 'output window, operand 0']
    %8 = vsyncpa [#allocation3], 0
    %s9 = scalar_lea.sflag [#allocation3], 1
    %10 = vsyncpa %s9, 0
    %11 = vsyncpa [#allocation4], 0
    %s12 = scalar_lea.sflag [#allocation4], 1
    %13 = vsyncpa %s12, 0
    loop: start=0, step=1, limit=4
    $region2: #{tpu_custom_call.1} parent=1 // loop_pre_header
      _
    $region3: #{tpu_custom_call.1} parent=1 // loop_header
      %s15 = sphi 0, %s19
      %p16 = scmp.ge.s32.totalorder %s15, 4
      %s25 = sphi 0, %s27
      %s28 = sphi 0, %s25
      %s29 = sphi 0, %s28
      %s45 = sphi 0, %s29
      %s49 = sphi 0, %s49
      %s51 = sphi 0, %s49
      %s52 = sphi 0, %s51
      %s66 = sphi 0, %s52
      %s70 = sphi 0, %s70
      %s72 = sphi 0, %s70
      %s73 = sphi 0, %s72
      %s87 = sphi 0, %s73
      %s93 = sphi 0, %s95
      %s96 = sphi 0, %s93
      %s97 = sphi 0, %s96
      %s113 = sphi 0, %s97
    $region4: #{tpu_custom_call.1} parent=1 // loop_header_branch
      %18 = sbr.rel (%p16) target = $region8
    $region5: #{tpu_custom_call.1} parent=1 // loop_body
      %s20 = ssub.s32 %s15, 1
      %s21 = ssub.s32 %s15, 2
      %s22 = sadd.s32 %s15, 1
      %s23 = ssub.s32 %s15, %s22
      %p24 = scmp.eq.s32.totalorder %s23, 0
      %s26 = sadd.s32 %s25, 1
      %s27 = scalar_select %p24, %s25, %s26
      %p30 = pneg %p24
      %p31 = scmp.eq.s32.totalorder %s15, 1
      %p32 = por %p30, %p31
      %p33 = scmp.ne.s32.totalorder %s25, %s28
      %p34 = scmp.eq.s32.totalorder %s15, 0
      %p35 = por %p33, %p34
      %p36 = scmp.ne.s32.totalorder %s25, %s28
      %p37 = scmp.eq.s32.totalorder %s20, 1
      %p38 = por %p36, %p37
      %p39 = scmp.ne.s32.totalorder %s28, %s29
      %p40 = scmp.eq.s32.totalorder %s20, 0
      %p41 = por %p39, %p40
      %p42 = scmp.ne.s32.totalorder %s28, %s29
      %p43 = scmp.eq.s32.totalorder %s21, 1
      %p44 = por %p42, %p43
      %p46 = scmp.ne.s32.totalorder %s29, %s45
      %p47 = scmp.eq.s32.totalorder %s21, 0
      %p48 = por %p46, %p47
      %s50 = sadd.s32 %s49, 1
      %p53 = scmp.eq.s32.totalorder %s15, 1
      %p54 = scmp.ne.s32.totalorder %s49, %s51
      %p55 = scmp.eq.s32.totalorder %s15, 0
      %p56 = por %p54, %p55
      %p57 = scmp.ne.s32.totalorder %s49, %s51
      %p58 = scmp.eq.s32.totalorder %s20, 1
      %p59 = por %p57, %p58
      %p60 = scmp.ne.s32.totalorder %s51, %s52
      %p61 = scmp.eq.s32.totalorder %s20, 0
      %p62 = por %p60, %p61
      %p63 = scmp.ne.s32.totalorder %s51, %s52
      %p64 = scmp.eq.s32.totalorder %s21, 1
      %p65 = por %p63, %p64
      %p67 = scmp.ne.s32.totalorder %s52, %s66
      %p68 = scmp.eq.s32.totalorder %s21, 0
      %p69 = por %p67, %p68
      %s71 = sadd.s32 %s70, 1
      %p74 = scmp.eq.s32.totalorder %s15, 1
      %p75 = scmp.ne.s32.totalorder %s70, %s72
      %p76 = scmp.eq.s32.totalorder %s15, 0
      %p77 = por %p75, %p76
      %p78 = scmp.ne.s32.totalorder %s70, %s72
      %p79 = scmp.eq.s32.totalorder %s20, 1
      %p80 = por %p78, %p79
      %p81 = scmp.ne.s32.totalorder %s72, %s73
      %p82 = scmp.eq.s32.totalorder %s20, 0
      %p83 = por %p81, %p82
      %p84 = scmp.ne.s32.totalorder %s72, %s73
      %p85 = scmp.eq.s32.totalorder %s21, 1
      %p86 = por %p84, %p85
      %p88 = scmp.ne.s32.totalorder %s73, %s87
      %p89 = scmp.eq.s32.totalorder %s21, 0
      %p90 = por %p88, %p89
      %s91 = ssub.s32 %s15, %s22
      %p92 = scmp.eq.s32.totalorder %s91, 0
      %s94 = sadd.s32 %s93, 1
      %s95 = scalar_select %p92, %s93, %s94
      %p98 = pneg %p92
      %p99 = scmp.eq.s32.totalorder %s15, 1
      %p100 = por %p98, %p99
      %p101 = scmp.ne.s32.totalorder %s93, %s96
      %p102 = scmp.eq.s32.totalorder %s15, 0
      %p103 = por %p101, %p102
      %p104 = scmp.ne.s32.totalorder %s93, %s96
      %p105 = scmp.eq.s32.totalorder %s20, 1
      %p106 = por %p104, %p105
      %p107 = scmp.ne.s32.totalorder %s96, %s97
      %p108 = scmp.eq.s32.totalorder %s20, 0
      %p109 = por %p107, %p108
      %p110 = scmp.ne.s32.totalorder %s96, %s97
      %p111 = scmp.eq.s32.totalorder %s21, 1
      %p112 = por %p110, %p111
      %p114 = scmp.ne.s32.totalorder %s97, %s113
      %p115 = scmp.eq.s32.totalorder %s21, 0
      %p116 = por %p114, %p115
      %p117 = scmp.le.s32.totalorder 1, %s15
      %p118 = scmp.lt.s32.totalorder %s15, 3
      %p119 = pnand %p117, %p118
      %p120 = pneg %p119
      // Predicated region
      $region9: #{tpu_custom_call.1} parent=5 // pred_check
        _
      $region10: #{tpu_custom_call.1} parent=5 // pred_check_branch
        %122 = sbr.rel (%p119) target = $region12
      $region11: #{tpu_custom_call.1} parent=5 // pred_region
        %s123 = ssub.s32 %s15, 1
        // Predicated region
        $region13: #{tpu_custom_call.1} parent=11 // pred_check
          %p124 = pneg %p62
        $region14: #{tpu_custom_call.1} parent=11 // pred_check_branch
          %126 = sbr.rel (%p124) target = $region16
        $region15: #{tpu_custom_call.1} parent=11 // pred_region
          _
        $region16: #{tpu_custom_call.1} parent=11 // pred_fallthru
          _
        // Predicated region
        $region17: #{tpu_custom_call.1} parent=11 // pred_check
          %p127 = pneg %p83
        $region18: #{tpu_custom_call.1} parent=11 // pred_check_branch
          %129 = sbr.rel (%p127) target = $region20
        $region19: #{tpu_custom_call.1} parent=11 // pred_region
          _
        $region20: #{tpu_custom_call.1} parent=11 // pred_fallthru
          _
      $region12: #{tpu_custom_call.1} parent=5 // pred_fallthru
        _
      %p130 = scmp.lt.s32.totalorder %s15, 2
      // Predicated region
      $region21: #{tpu_custom_call.1} parent=5 // pred_check
        %p131 = pneg %p130
      $region22: #{tpu_custom_call.1} parent=5 // pred_check_branch
        %133 = sbr.rel (%p131) target = $region24
      $region23: #{tpu_custom_call.1} parent=5 // pred_region
        // Predicated region
        $region25: #{tpu_custom_call.1} parent=23 // pred_check
          %p134 = pneg %p35
        $region26: #{tpu_custom_call.1} parent=23 // pred_check_branch
          %136 = sbr.rel (%p134) target = $region28
        $region27: #{tpu_custom_call.1} parent=23 // pred_region
          %s137 = sand.u32 %s25, 1
          %s138 = scalar_lea.sflag [#allocation3], %s137
          %s139 = sand.u32 %s25, 1
          %s140 = smul.addr %s139, 16
          %s141 = scalar_lea.vmem [#allocation2], %s140
          %s142 = smul.u32 2, %s15
          %144 = vsyncadd %s138, 0
          %s145 = smul.addr %s142, 8
          %s146 = scalar_lea.hbm %s0, %s145
          %s148 = sshll.u32 %s146, 4
          %s149 = int_to_ptr.hbm [resolvable:$true] %s148
          %s150 = sshll.u32 %s141, 4
          %s151 = int_to_ptr.vmem [resolvable:$true] %s150
          %153 = dma.hbm_to_vmem [thread:$0]  %s149, 256, %s151, %s138
        $region28: #{tpu_custom_call.1} parent=23 // pred_fallthru
          _
      $region24: #{tpu_custom_call.1} parent=5 // pred_fallthru
        _
      %p154 = scmp.le.s32.totalorder 1, %s15
      %p155 = scmp.lt.s32.totalorder %s15, 3
      %p156 = pnand %p154, %p155
      %p157 = pneg %p156
      // Predicated region
      $region29: #{tpu_custom_call.1} parent=5 // pred_check
        _
      $region30: #{tpu_custom_call.1} parent=5 // pred_check_branch
        %159 = sbr.rel (%p156) target = $region32
      $region31: #{tpu_custom_call.1} parent=5 // pred_region
        %s160 = ssub.s32 %s15, 1
        %s161 = sand.u32 %s28, 1
        %s162 = scalar_lea.sflag [#allocation3], %s161
        %s163 = sand.u32 %s28, 1
        %s164 = smul.addr %s163, 16
        %s165 = scalar_lea.vmem [#allocation2], %s164
        // Predicated region
        $region33: #{tpu_custom_call.1} parent=31 // pred_check
          %p166 = pneg %p41
        $region34: #{tpu_custom_call.1} parent=31 // pred_check_branch
          %168 = sbr.rel (%p166) target = $region36
        $region35: #{tpu_custom_call.1} parent=31 // pred_region
          %170 = dma.done %s162, 256
        $region36: #{tpu_custom_call.1} parent=31 // pred_fallthru
          _
        %s171 = sand.u32 %s28, 1
        %s172 = scalar_lea.sflag [#allocation3], %s171
        %s173 = sand.u32 %s28, 1
        %s174 = smul.addr %s173, 16
        %s175 = scalar_lea.vmem [#allocation2], %s174
        %p176 = pneg %p41
        %p177 = pneg %p38
        %p178 = pneg %p62
        %p179 = pneg %p59
        %p180 = pneg %p83
        %p181 = pneg %p80
        %p182 = pneg %p109
        %p183 = pneg %p106
        %s184 = sand.u32 %s96, 1
        %s185 = scalar_lea.sflag [#allocation4], %s184
        %s186 = sand.u32 %s96, 1
        %s187 = smul.addr %s186, 2
        %s188 = scalar_lea.vmem [#allocation5], %s187
        %s189 = smul.u32 2, %s20
        %s190 = smul.u32 2, %s20
        %v192 = vld [vmem:[%s165] sm:$0xff]
        %v193 = vld [vmem:[%s165 + $0x8] sm:$0xff]
        %v194 = vld [vmem:[%s1] sm:$0xff]
        %v195 = vld [vmem:[%s1 + $0x8] sm:$0xff]
        %v196 = vld [vmem:[%s1 + $0x10] sm:$0xff]
        %v197 = vld [vmem:[%s1 + $0x18] sm:$0xff]
        %v198 = vpack.c.bf16 %v195, %v194
        %v199 = vpack.c.bf16 %v197, %v196
        %v200 = vld [vmem:[%s2] sm:$0xff]
        %v201 = vld [vmem:[%s2 + $0x8] sm:$0xff]
        %v202 = vld [vmem:[%s2 + $0x10] sm:$0xff]
        %v203 = vld [vmem:[%s2 + $0x18] sm:$0xff]
        %v204 = vpack.c.bf16 %v192, %v192
        %v205 = vpack.c.bf16 %v193, %v193
        %207 = vset.pattern.permute.xlu0 0
        %208 = vperm.xlu0 %207, %v200
        %v209 = vpop.permute.xlu0 %208
        %212 = vset.pattern.permute.xlu0 0
        %213 = vperm.xlu0 %212, %v201
        %v214 = vpop.permute.xlu0 %213
        %217 = vset.pattern.permute.xlu0 0
        %218 = vperm.xlu0 %217, %v202
        %v219 = vpop.permute.xlu0 %218
        %222 = vset.pattern.permute.xlu0 0
        %223 = vperm.xlu0 %222, %v203
        %v224 = vpop.permute.xlu0 %223
        %vm226 = vcmask 64512
        %v228 = vsel %vm226, %v198, 0
        %v231 = vsel %vm226, %v199, 0
        %vm233 = vcmask 1043456
        %v235 = vsel %vm233, %v204, 0
        %v238 = vsel %vm233, %v205, 0
        %240 = vmatpush.bf16.msra.mxu0 0
        %241 = vmatpush.bf16.msra.mxu0 0
        %242 = vmatpush.bf16.msra.mxu0 0
        %243 = vmatpush.bf16.msra.mxu0 0
        %244 = vmatpush.bf16.msra.mxu0 0
        %245 = vmatpush.bf16.msra.mxu0 0
        %246 = vmatpush.bf16.msra.mxu0 0
        %247 = vmatpush.bf16.msra.mxu0 %v235
        %248 = vmatmul.bf16.gmra.mxu0 %v228
        %v249 = vpop.f32.mrf.mxu0
        %v250 = vadd.f32 %v209, %v249
        %v251 = vpop.f32.mrf.mxu0
        %v252 = vadd.f32 %v214, %v251
        %253 = vmatmul.bf16.gmra.mxu0 %v231
        %v254 = vpop.f32.mrf.mxu0
        %v255 = vadd.f32 %v219, %v254
        %v256 = vpop.f32.mrf.mxu0
        %v257 = vadd.f32 %v224, %v256
        %258 = vdwg.mxu0
        %259 = vmatpush.bf16.msra.mxu0 0
        %260 = vmatpush.bf16.msra.mxu0 0
        %261 = vmatpush.bf16.msra.mxu0 0
        %262 = vmatpush.bf16.msra.mxu0 0
        %263 = vmatpush.bf16.msra.mxu0 0
        %264 = vmatpush.bf16.msra.mxu0 0
        %265 = vmatpush.bf16.msra.mxu0 0
        %266 = vmatpush.bf16.msra.mxu0 %v238
        %267 = vmatmul.bf16.gmra.mxu0 %v228
        %v268 = vpop.f32.mrf.mxu0
        %v269 = vadd.f32 %v209, %v268
        %v270 = vpop.f32.mrf.mxu0
        %v271 = vadd.f32 %v214, %v270
        %272 = vmatmul.bf16.gmra.mxu0 %v231
        %v273 = vpop.f32.mrf.mxu0
        %v274 = vadd.f32 %v219, %v273
        %v275 = vpop.f32.mrf.mxu0
        %v276 = vadd.f32 %v224, %v275
        %277 = vdwg.mxu0
        %v278 = vmax.f32 %v250, 0.0
        %v279 = vmax.f32 %v269, 0.0
        %v280 = vmax.f32 %v252, 0.0
        %v281 = vmax.f32 %v271, 0.0
        %v282 = vmax.f32 %v255, 0.0
        %v283 = vmax.f32 %v274, 0.0
        %v284 = vmax.f32 %v257, 0.0
        %v285 = vmax.f32 %v276, 0.0
        %s286 = scalar_lea.vmem %s1, 128
        %v287 = vld [vmem:[%s286] sm:$0xff]
        %v288 = vld [vmem:[%s286 + $0x8] sm:$0xff]
        %v289 = vld [vmem:[%s286 + $0x10] sm:$0xff]
        %v290 = vld [vmem:[%s286 + $0x18] sm:$0xff]
        %v291 = vld [vmem:[%s286 + $0x20] sm:$0xff]
        %v292 = vld [vmem:[%s286 + $0x28] sm:$0xff]
        %v293 = vld [vmem:[%s286 + $0x30] sm:$0xff]
        %v294 = vld [vmem:[%s286 + $0x38] sm:$0xff]
        %v295 = vpack.c.bf16 %v288, %v287
        %v296 = vpack.c.bf16 %v290, %v289
        %v297 = vpack.c.bf16 %v292, %v291
        %v298 = vpack.c.bf16 %v294, %v293
        %s299 = scalar_lea.vmem %s2, 128
        %v300 = vld [vmem:[%s299] sm:$0xff]
        %v301 = vld [vmem:[%s299 + $0x8] sm:$0xff]
        %v302 = vld [vmem:[%s299 + $0x10] sm:$0xff]
        %v303 = vld [vmem:[%s299 + $0x18] sm:$0xff]
        %v304 = vld [vmem:[%s299 + $0x20] sm:$0xff]
        %v305 = vld [vmem:[%s299 + $0x28] sm:$0xff]
        %v306 = vld [vmem:[%s299 + $0x30] sm:$0xff]
        %v307 = vld [vmem:[%s299 + $0x38] sm:$0xff]
        %v308 = vpack.c.bf16 %v280, %v278
        %v309 = vpack.c.bf16 %v281, %v279
        %v310 = vpack.c.bf16 %v284, %v282
        %v311 = vpack.c.bf16 %v285, %v283
        %313 = vset.pattern.permute.xlu0 0
        %314 = vperm.xlu0 %313, %v300
        %v315 = vpop.permute.xlu0 %314
        %318 = vset.pattern.permute.xlu0 0
        %319 = vperm.xlu0 %318, %v301
        %v320 = vpop.permute.xlu0 %319
        %323 = vset.pattern.permute.xlu0 0
        %324 = vperm.xlu0 %323, %v302
        %v325 = vpop.permute.xlu0 %324
        %328 = vset.pattern.permute.xlu0 0
        %329 = vperm.xlu0 %328, %v303
        %v330 = vpop.permute.xlu0 %329
        %333 = vset.pattern.permute.xlu0 0
        %334 = vperm.xlu0 %333, %v304
        %v335 = vpop.permute.xlu0 %334
        %338 = vset.pattern.permute.xlu0 0
        %339 = vperm.xlu0 %338, %v305
        %v340 = vpop.permute.xlu0 %339
        %343 = vset.pattern.permute.xlu0 0
        %344 = vperm.xlu0 %343, %v306
        %v345 = vpop.permute.xlu0 %344
        %348 = vset.pattern.permute.xlu0 0
        %349 = vperm.xlu0 %348, %v307
        %v350 = vpop.permute.xlu0 %349
        %vm352 = vcmask 261120
        %v354 = vsel %vm352, %v295, 0
        %v357 = vsel %vm352, %v296, 0
        %v360 = vsel %vm352, %v297, 0
        %v363 = vsel %vm352, %v298, 0
        %365 = vmatpush.bf16.msra.mxu0 0
        %366 = vmatpush.bf16.msra.mxu0 0
        %367 = vmatpush.bf16.msra.mxu0 0
        %368 = vmatpush.bf16.msra.mxu0 0
        %369 = vmatpush.bf16.msra.mxu0 0
        %370 = vmatpush.bf16.msra.mxu0 0
        %371 = vmatpush.bf16.msra.mxu0 %v310
        %372 = vmatpush.bf16.msra.mxu0 %v308
        %373 = vmatmul.bf16.gmra.mxu0 %v354
        %v374 = vpop.f32.mrf.mxu0
        %v375 = vadd.f32 %v315, %v374
        %v376 = vpop.f32.mrf.mxu0
        %v377 = vadd.f32 %v320, %v376
        %378 = vmatmul.bf16.gmra.mxu0 %v357
        %v379 = vpop.f32.mrf.mxu0
        %v380 = vadd.f32 %v325, %v379
        %v381 = vpop.f32.mrf.mxu0
        %v382 = vadd.f32 %v330, %v381
        %383 = vmatmul.bf16.gmra.mxu0 %v360
        %v384 = vpop.f32.mrf.mxu0
        %v385 = vadd.f32 %v335, %v384
        %v386 = vpop.f32.mrf.mxu0
        %v387 = vadd.f32 %v340, %v386
        %388 = vmatmul.bf16.gmra.mxu0 %v363
        %v389 = vpop.f32.mrf.mxu0
        %v390 = vadd.f32 %v345, %v389
        %v391 = vpop.f32.mrf.mxu0
        %v392 = vadd.f32 %v350, %v391
        %393 = vdwg.mxu0
        %394 = vmatpush.bf16.msra.mxu0 0
        %395 = vmatpush.bf16.msra.mxu0 0
        %396 = vmatpush.bf16.msra.mxu0 0
        %397 = vmatpush.bf16.msra.mxu0 0
        %398 = vmatpush.bf16.msra.mxu0 0
        %399 = vmatpush.bf16.msra.mxu0 0
        %400 = vmatpush.bf16.msra.mxu0 %v311
        %401 = vmatpush.bf16.msra.mxu0 %v309
        %402 = vmatmul.bf16.gmra.mxu0 %v354
        %v403 = vpop.f32.mrf.mxu0
        %v404 = vadd.f32 %v315, %v403
        %v405 = vpop.f32.mrf.mxu0
        %v406 = vadd.f32 %v320, %v405
        %407 = vmatmul.bf16.gmra.mxu0 %v357
        %v408 = vpop.f32.mrf.mxu0
        %v409 = vadd.f32 %v325, %v408
        %v410 = vpop.f32.mrf.mxu0
        %v411 = vadd.f32 %v330, %v410
        %412 = vmatmul.bf16.gmra.mxu0 %v360
        %v413 = vpop.f32.mrf.mxu0
        %v414 = vadd.f32 %v335, %v413
        %v415 = vpop.f32.mrf.mxu0
        %v416 = vadd.f32 %v340, %v415
        %417 = vmatmul.bf16.gmra.mxu0 %v363
        %v418 = vpop.f32.mrf.mxu0
        %v419 = vadd.f32 %v345, %v418
        %v420 = vpop.f32.mrf.mxu0
        %v421 = vadd.f32 %v350, %v420
        %422 = vdwg.mxu0
        %v423 = vmax.f32 %v375, 0.0
        %v424 = vmax.f32 %v404, 0.0
        %v425 = vmax.f32 %v377, 0.0
        %v426 = vmax.f32 %v406, 0.0
        %v427 = vmax.f32 %v380, 0.0
        %v428 = vmax.f32 %v409, 0.0
        %v429 = vmax.f32 %v382, 0.0
        %v430 = vmax.f32 %v411, 0.0
        %v431 = vmax.f32 %v385, 0.0
        %v432 = vmax.f32 %v414, 0.0
        %v433 = vmax.f32 %v387, 0.0
        %v434 = vmax.f32 %v416, 0.0
        %v435 = vmax.f32 %v390, 0.0
        %v436 = vmax.f32 %v419, 0.0
        %v437 = vmax.f32 %v392, 0.0
        %v438 = vmax.f32 %v421, 0.0
        %s439 = scalar_lea.vmem %s1, 256
        %v440 = vld [vmem:[%s439] sm:$0xff]
        %v441 = vld [vmem:[%s439 + $0x8] sm:$0xff]
        %v442 = vld [vmem:[%s439 + $0x10] sm:$0xff]
        %v443 = vld [vmem:[%s439 + $0x18] sm:$0xff]
        %v444 = vld [vmem:[%s439 + $0x20] sm:$0xff]
        %v445 = vld [vmem:[%s439 + $0x28] sm:$0xff]
        %v446 = vld [vmem:[%s439 + $0x30] sm:$0xff]
        %v447 = vld [vmem:[%s439 + $0x38] sm:$0xff]
        %v448 = vld [vmem:[%s439 + $0x40] sm:$0xff]
        %v449 = vld [vmem:[%s439 + $0x48] sm:$0xff]
        %v450 = vld [vmem:[%s439 + $0x50] sm:$0xff]
        %v451 = vld [vmem:[%s439 + $0x58] sm:$0xff]
        %v452 = vld [vmem:[%s439 + $0x60] sm:$0xff]
        %v453 = vld [vmem:[%s439 + $0x68] sm:$0xff]
        %v454 = vld [vmem:[%s439 + $0x70] sm:$0xff]
        %v455 = vld [vmem:[%s439 + $0x78] sm:$0xff]
        %v456 = vpack.c.bf16 %v441, %v440
        %v457 = vpack.c.bf16 %v443, %v442
        %v458 = vpack.c.bf16 %v445, %v444
        %v459 = vpack.c.bf16 %v447, %v446
        %v460 = vpack.c.bf16 %v449, %v448
        %v461 = vpack.c.bf16 %v451, %v450
        %v462 = vpack.c.bf16 %v453, %v452
        %v463 = vpack.c.bf16 %v455, %v454
        %s464 = scalar_lea.vmem %s2, 256
        %v465 = vld [vmem:[%s464] sm:$0xff]
        %v466 = vld [vmem:[%s464 + $0x8] sm:$0xff]
        %v467 = vld [vmem:[%s464 + $0x10] sm:$0xff]
        %v468 = vld [vmem:[%s464 + $0x18] sm:$0xff]
        %v469 = vld [vmem:[%s464 + $0x20] sm:$0xff]
        %v470 = vld [vmem:[%s464 + $0x28] sm:$0xff]
        %v471 = vld [vmem:[%s464 + $0x30] sm:$0xff]
        %v472 = vld [vmem:[%s464 + $0x38] sm:$0xff]
        %v473 = vld [vmem:[%s464 + $0x40] sm:$0xff]
        %v474 = vld [vmem:[%s464 + $0x48] sm:$0xff]
        %v475 = vld [vmem:[%s464 + $0x50] sm:$0xff]
        %v476 = vld [vmem:[%s464 + $0x58] sm:$0xff]
        %v477 = vld [vmem:[%s464 + $0x60] sm:$0xff]
        %v478 = vld [vmem:[%s464 + $0x68] sm:$0xff]
        %v479 = vld [vmem:[%s464 + $0x70] sm:$0xff]
        %v480 = vld [vmem:[%s464 + $0x78] sm:$0xff]
        %v481 = vpack.c.bf16 %v425, %v423
        %v482 = vpack.c.bf16 %v426, %v424
        %v483 = vpack.c.bf16 %v429, %v427
        %v484 = vpack.c.bf16 %v430, %v428
        %v485 = vpack.c.bf16 %v433, %v431
        %v486 = vpack.c.bf16 %v434, %v432
        %v487 = vpack.c.bf16 %v437, %v435
        %v488 = vpack.c.bf16 %v438, %v436
        %490 = vset.pattern.permute.xlu0 0
        %491 = vperm.xlu0 %490, %v465
        %v492 = vpop.permute.xlu0 %491
        %495 = vset.pattern.permute.xlu0 0
        %496 = vperm.xlu0 %495, %v466
        %v497 = vpop.permute.xlu0 %496
        %500 = vset.pattern.permute.xlu0 0
        %501 = vperm.xlu0 %500, %v467
        %v502 = vpop.permute.xlu0 %501
        %505 = vset.pattern.permute.xlu0 0
        %506 = vperm.xlu0 %505, %v468
        %v507 = vpop.permute.xlu0 %506
        %510 = vset.pattern.permute.xlu0 0
        %511 = vperm.xlu0 %510, %v469
        %v512 = vpop.permute.xlu0 %511
        %515 = vset.pattern.permute.xlu0 0
        %516 = vperm.xlu0 %515, %v470
        %v517 = vpop.permute.xlu0 %516
        %520 = vset.pattern.permute.xlu0 0
        %521 = vperm.xlu0 %520, %v471
        %v522 = vpop.permute.xlu0 %521
        %525 = vset.pattern.permute.xlu0 0
        %526 = vperm.xlu0 %525, %v472
        %v527 = vpop.permute.xlu0 %526
        %530 = vset.pattern.permute.xlu0 0
        %531 = vperm.xlu0 %530, %v473
        %v532 = vpop.permute.xlu0 %531
        %535 = vset.pattern.permute.xlu0 0
        %536 = vperm.xlu0 %535, %v474
        %v537 = vpop.permute.xlu0 %536
        %540 = vset.pattern.permute.xlu0 0
        %541 = vperm.xlu0 %540, %v475
        %v542 = vpop.permute.xlu0 %541
        %545 = vset.pattern.permute.xlu0 0
        %546 = vperm.xlu0 %545, %v476
        %v547 = vpop.permute.xlu0 %546
        %550 = vset.pattern.permute.xlu0 0
        %551 = vperm.xlu0 %550, %v477
        %v552 = vpop.permute.xlu0 %551
        %555 = vset.pattern.permute.xlu0 0
        %556 = vperm.xlu0 %555, %v478
        %v557 = vpop.permute.xlu0 %556
        %560 = vset.pattern.permute.xlu0 0
        %561 = vperm.xlu0 %560, %v479
        %v562 = vpop.permute.xlu0 %561
        %565 = vset.pattern.permute.xlu0 0
        %566 = vperm.xlu0 %565, %v480
        %v567 = vpop.permute.xlu0 %566
        %vm569 = vcmask 523264
        %v571 = vsel %vm569, %v456, 0
        %v574 = vsel %vm569, %v457, 0
        %v577 = vsel %vm569, %v458, 0
        %v580 = vsel %vm569, %v459, 0
        %v583 = vsel %vm569, %v460, 0
        %v586 = vsel %vm569, %v461, 0
        %v589 = vsel %vm569, %v462, 0
        %v592 = vsel %vm569, %v463, 0
        %594 = vmatpush.bf16.msra.mxu0 0
        %595 = vmatpush.bf16.msra.mxu0 0
        %596 = vmatpush.bf16.msra.mxu0 0
        %597 = vmatpush.bf16.msra.mxu0 0
        %598 = vmatpush.bf16.msra.mxu0 %v487
        %599 = vmatpush.bf16.msra.mxu0 %v485
        %600 = vmatpush.bf16.msra.mxu0 %v483
        %601 = vmatpush.bf16.msra.mxu0 %v481
        %602 = vmatmul.bf16.gmra.mxu0 %v571
        %v603 = vpop.f32.mrf.mxu0
        %v604 = vadd.f32 %v492, %v603
        %v605 = vpop.f32.mrf.mxu0
        %v606 = vadd.f32 %v497, %v605
        %607 = vmatmul.bf16.gmra.mxu0 %v574
        %v608 = vpop.f32.mrf.mxu0
        %v609 = vadd.f32 %v502, %v608
        %v610 = vpop.f32.mrf.mxu0
        %v611 = vadd.f32 %v507, %v610
        %612 = vmatmul.bf16.gmra.mxu0 %v577
        %v613 = vpop.f32.mrf.mxu0
        %v614 = vadd.f32 %v512, %v613
        %v615 = vpop.f32.mrf.mxu0
        %v616 = vadd.f32 %v517, %v615
        %617 = vmatmul.bf16.gmra.mxu0 %v580
        %v618 = vpop.f32.mrf.mxu0
        %v619 = vadd.f32 %v522, %v618
        %v620 = vpop.f32.mrf.mxu0
        %v621 = vadd.f32 %v527, %v620
        %622 = vmatmul.bf16.gmra.mxu0 %v583
        %v623 = vpop.f32.mrf.mxu0
        %v624 = vadd.f32 %v532, %v623
        %v625 = vpop.f32.mrf.mxu0
        %v626 = vadd.f32 %v537, %v625
        %627 = vmatmul.bf16.gmra.mxu0 %v586
        %v628 = vpop.f32.mrf.mxu0
        %v629 = vadd.f32 %v542, %v628
        %v630 = vpop.f32.mrf.mxu0
        %v631 = vadd.f32 %v547, %v630
        %632 = vmatmul.bf16.gmra.mxu0 %v589
        %v633 = vpop.f32.mrf.mxu0
        %v634 = vadd.f32 %v552, %v633
        %v635 = vpop.f32.mrf.mxu0
        %v636 = vadd.f32 %v557, %v635
        %637 = vmatmul.bf16.gmra.mxu0 %v592
        %v638 = vpop.f32.mrf.mxu0
        %v639 = vadd.f32 %v562, %v638
        %v640 = vpop.f32.mrf.mxu0
        %v641 = vadd.f32 %v567, %v640
        %642 = vdwg.mxu0
        %643 = vmatpush.bf16.msra.mxu0 0
        %644 = vmatpush.bf16.msra.mxu0 0
        %645 = vmatpush.bf16.msra.mxu0 0
        %646 = vmatpush.bf16.msra.mxu0 0
        %647 = vmatpush.bf16.msra.mxu0 %v488
        %648 = vmatpush.bf16.msra.mxu0 %v486
        %649 = vmatpush.bf16.msra.mxu0 %v484
        %650 = vmatpush.bf16.msra.mxu0 %v482
        %651 = vmatmul.bf16.gmra.mxu0 %v571
        %v652 = vpop.f32.mrf.mxu0
        %v653 = vadd.f32 %v492, %v652
        %v654 = vpop.f32.mrf.mxu0
        %v655 = vadd.f32 %v497, %v654
        %656 = vmatmul.bf16.gmra.mxu0 %v574
        %v657 = vpop.f32.mrf.mxu0
        %v658 = vadd.f32 %v502, %v657
        %v659 = vpop.f32.mrf.mxu0
        %v660 = vadd.f32 %v507, %v659
        %661 = vmatmul.bf16.gmra.mxu0 %v577
        %v662 = vpop.f32.mrf.mxu0
        %v663 = vadd.f32 %v512, %v662
        %v664 = vpop.f32.mrf.mxu0
        %v665 = vadd.f32 %v517, %v664
        %666 = vmatmul.bf16.gmra.mxu0 %v580
        %v667 = vpop.f32.mrf.mxu0
        %v668 = vadd.f32 %v522, %v667
        %v669 = vpop.f32.mrf.mxu0
        %v670 = vadd.f32 %v527, %v669
        %671 = vmatmul.bf16.gmra.mxu0 %v583
        %v672 = vpop.f32.mrf.mxu0
        %v673 = vadd.f32 %v532, %v672
        %v674 = vpop.f32.mrf.mxu0
        %v675 = vadd.f32 %v537, %v674
        %676 = vmatmul.bf16.gmra.mxu0 %v586
        %v677 = vpop.f32.mrf.mxu0
        %v678 = vadd.f32 %v542, %v677
        %v679 = vpop.f32.mrf.mxu0
        %v680 = vadd.f32 %v547, %v679
        %681 = vmatmul.bf16.gmra.mxu0 %v589
        %v682 = vpop.f32.mrf.mxu0
        %v683 = vadd.f32 %v552, %v682
        %v684 = vpop.f32.mrf.mxu0
        %v685 = vadd.f32 %v557, %v684
        %686 = vmatmul.bf16.gmra.mxu0 %v592
        %v687 = vpop.f32.mrf.mxu0
        %v688 = vadd.f32 %v562, %v687
        %v689 = vpop.f32.mrf.mxu0
        %v690 = vadd.f32 %v567, %v689
        %691 = vdwg.mxu0
        %v692 = vmax.f32 %v604, 0.0
        %v693 = vmax.f32 %v653, 0.0
        %v694 = vmax.f32 %v606, 0.0
        %v695 = vmax.f32 %v655, 0.0
        %v696 = vmax.f32 %v609, 0.0
        %v697 = vmax.f32 %v658, 0.0
        %v698 = vmax.f32 %v611, 0.0
        %v699 = vmax.f32 %v660, 0.0
        %v700 = vmax.f32 %v614, 0.0
        %v701 = vmax.f32 %v663, 0.0
        %v702 = vmax.f32 %v616, 0.0
        %v703 = vmax.f32 %v665, 0.0
        %v704 = vmax.f32 %v619, 0.0
        %v705 = vmax.f32 %v668, 0.0
        %v706 = vmax.f32 %v621, 0.0
        %v707 = vmax.f32 %v670, 0.0
        %v708 = vmax.f32 %v624, 0.0
        %v709 = vmax.f32 %v673, 0.0
        %v710 = vmax.f32 %v626, 0.0
        %v711 = vmax.f32 %v675, 0.0
        %v712 = vmax.f32 %v629, 0.0
        %v713 = vmax.f32 %v678, 0.0
        %v714 = vmax.f32 %v631, 0.0
        %v715 = vmax.f32 %v680, 0.0
        %v716 = vmax.f32 %v634, 0.0
        %v717 = vmax.f32 %v683, 0.0
        %v718 = vmax.f32 %v636, 0.0
        %v719 = vmax.f32 %v685, 0.0
        %v720 = vmax.f32 %v639, 0.0
        %v721 = vmax.f32 %v688, 0.0
        %v722 = vmax.f32 %v641, 0.0
        %v723 = vmax.f32 %v690, 0.0
        %s724 = scalar_lea.vmem %s1, 384
        %v725 = vld [vmem:[%s724] sm:$0xff]
        %v726 = vld [vmem:[%s724 + $0x8] sm:$0xff]
        %v727 = vld [vmem:[%s724 + $0x10] sm:$0xff]
        %v728 = vld [vmem:[%s724 + $0x18] sm:$0xff]
        %v729 = vld [vmem:[%s724 + $0x20] sm:$0xff]
        %v730 = vld [vmem:[%s724 + $0x28] sm:$0xff]
        %v731 = vld [vmem:[%s724 + $0x30] sm:$0xff]
        %v732 = vld [vmem:[%s724 + $0x38] sm:$0xff]
        %v733 = vpack.c.bf16 %v726, %v725
        %v734 = vpack.c.bf16 %v728, %v727
        %v735 = vpack.c.bf16 %v730, %v729
        %v736 = vpack.c.bf16 %v732, %v731
        %s737 = scalar_lea.vmem %s2, 384
        %v738 = vld [vmem:[%s737] sm:$0xff]
        %v739 = vld [vmem:[%s737 + $0x8] sm:$0xff]
        %v740 = vld [vmem:[%s737 + $0x10] sm:$0xff]
        %v741 = vld [vmem:[%s737 + $0x18] sm:$0xff]
        %v742 = vld [vmem:[%s737 + $0x20] sm:$0xff]
        %v743 = vld [vmem:[%s737 + $0x28] sm:$0xff]
        %v744 = vld [vmem:[%s737 + $0x30] sm:$0xff]
        %v745 = vld [vmem:[%s737 + $0x38] sm:$0xff]
        %v746 = vpack.c.bf16 %v694, %v692
        %v747 = vpack.c.bf16 %v695, %v693
        %v748 = vpack.c.bf16 %v698, %v696
        %v749 = vpack.c.bf16 %v699, %v697
        %v750 = vpack.c.bf16 %v702, %v700
        %v751 = vpack.c.bf16 %v703, %v701
        %v752 = vpack.c.bf16 %v706, %v704
        %v753 = vpack.c.bf16 %v707, %v705
        %v754 = vpack.c.bf16 %v710, %v708
        %v755 = vpack.c.bf16 %v711, %v709
        %v756 = vpack.c.bf16 %v714, %v712
        %v757 = vpack.c.bf16 %v715, %v713
        %v758 = vpack.c.bf16 %v718, %v716
        %v759 = vpack.c.bf16 %v719, %v717
        %v760 = vpack.c.bf16 %v722, %v720
        %v761 = vpack.c.bf16 %v723, %v721
        %763 = vset.pattern.permute.xlu0 0
        %764 = vperm.xlu0 %763, %v738
        %v765 = vpop.permute.xlu0 %764
        %768 = vset.pattern.permute.xlu0 0
        %769 = vperm.xlu0 %768, %v739
        %v770 = vpop.permute.xlu0 %769
        %773 = vset.pattern.permute.xlu0 0
        %774 = vperm.xlu0 %773, %v740
        %v775 = vpop.permute.xlu0 %774
        %778 = vset.pattern.permute.xlu0 0
        %779 = vperm.xlu0 %778, %v741
        %v780 = vpop.permute.xlu0 %779
        %783 = vset.pattern.permute.xlu0 0
        %784 = vperm.xlu0 %783, %v742
        %v785 = vpop.permute.xlu0 %784
        %788 = vset.pattern.permute.xlu0 0
        %789 = vperm.xlu0 %788, %v743
        %v790 = vpop.permute.xlu0 %789
        %793 = vset.pattern.permute.xlu0 0
        %794 = vperm.xlu0 %793, %v744
        %v795 = vpop.permute.xlu0 %794
        %798 = vset.pattern.permute.xlu0 0
        %799 = vperm.xlu0 %798, %v745
        %v800 = vpop.permute.xlu0 %799
        %802 = vmatpush.bf16.msra.mxu0 %v760
        %803 = vmatpush.bf16.msra.mxu0 %v758
        %804 = vmatpush.bf16.msra.mxu0 %v756
        %805 = vmatpush.bf16.msra.mxu0 %v754
        %806 = vmatpush.bf16.msra.mxu0 %v752
        %807 = vmatpush.bf16.msra.mxu0 %v750
        %808 = vmatpush.bf16.msra.mxu0 %v748
        %809 = vmatpush.bf16.msra.mxu0 %v746
        %810 = vmatmul.bf16.gmra.mxu0 %v733
        %v811 = vpop.f32.mrf.mxu0
        %v812 = vadd.f32 %v765, %v811
        %v813 = vpop.f32.mrf.mxu0
        %v814 = vadd.f32 %v770, %v813
        %815 = vmatmul.bf16.gmra.mxu0 %v734
        %v816 = vpop.f32.mrf.mxu0
        %v817 = vadd.f32 %v775, %v816
        %v818 = vpop.f32.mrf.mxu0
        %v819 = vadd.f32 %v780, %v818
        %820 = vmatmul.bf16.gmra.mxu0 %v735
        %v821 = vpop.f32.mrf.mxu0
        %v822 = vadd.f32 %v785, %v821
        %v823 = vpop.f32.mrf.mxu0
        %v824 = vadd.f32 %v790, %v823
        %825 = vmatmul.bf16.gmra.mxu0 %v736
        %v826 = vpop.f32.mrf.mxu0
        %v827 = vadd.f32 %v795, %v826
        %v828 = vpop.f32.mrf.mxu0
        %v829 = vadd.f32 %v800, %v828
        %830 = vdwg.mxu0
        %831 = vmatpush.bf16.msra.mxu0 %v761
        %832 = vmatpush.bf16.msra.mxu0 %v759
        %833 = vmatpush.bf16.msra.mxu0 %v757
        %834 = vmatpush.bf16.msra.mxu0 %v755
        %835 = vmatpush.bf16.msra.mxu0 %v753
        %836 = vmatpush.bf16.msra.mxu0 %v751
        %837 = vmatpush.bf16.msra.mxu0 %v749
        %838 = vmatpush.bf16.msra.mxu0 %v747
        %839 = vmatmul.bf16.gmra.mxu0 %v733
        %v840 = vpop.f32.mrf.mxu0
        %v841 = vadd.f32 %v765, %v840
        %v842 = vpop.f32.mrf.mxu0
        %v843 = vadd.f32 %v770, %v842
        %844 = vmatmul.bf16.gmra.mxu0 %v734
        %v845 = vpop.f32.mrf.mxu0
        %v846 = vadd.f32 %v775, %v845
        %v847 = vpop.f32.mrf.mxu0
        %v848 = vadd.f32 %v780, %v847
        %849 = vmatmul.bf16.gmra.mxu0 %v735
        %v850 = vpop.f32.mrf.mxu0
        %v851 = vadd.f32 %v785, %v850
        %v852 = vpop.f32.mrf.mxu0
        %v853 = vadd.f32 %v790, %v852
        %854 = vmatmul.bf16.gmra.mxu0 %v736
        %v855 = vpop.f32.mrf.mxu0
        %v856 = vadd.f32 %v795, %v855
        %v857 = vpop.f32.mrf.mxu0
        %v858 = vadd.f32 %v800, %v857
        %859 = vdwg.mxu0
        %v860 = vmax.f32 %v812, 0.0
        %v861 = vmax.f32 %v841, 0.0
        %v862 = vmax.f32 %v814, 0.0
        %v863 = vmax.f32 %v843, 0.0
        %v864 = vmax.f32 %v817, 0.0
        %v865 = vmax.f32 %v846, 0.0
        %v866 = vmax.f32 %v819, 0.0
        %v867 = vmax.f32 %v848, 0.0
        %v868 = vmax.f32 %v822, 0.0
        %v869 = vmax.f32 %v851, 0.0
        %v870 = vmax.f32 %v824, 0.0
        %v871 = vmax.f32 %v853, 0.0
        %v872 = vmax.f32 %v827, 0.0
        %v873 = vmax.f32 %v856, 0.0
        %v874 = vmax.f32 %v829, 0.0
        %v875 = vmax.f32 %v858, 0.0
        %s876 = scalar_lea.vmem %s1, 512
        %v877 = vld [vmem:[%s876] sm:$0xff]
        %v878 = vld [vmem:[%s876 + $0x8] sm:$0xff]
        %v879 = vld [vmem:[%s876 + $0x10] sm:$0xff]
        %v880 = vld [vmem:[%s876 + $0x18] sm:$0xff]
        %v881 = vpack.c.bf16 %v878, %v877
        %v882 = vpack.c.bf16 %v880, %v879
        %s883 = scalar_lea.vmem %s2, 512
        %v884 = vld [vmem:[%s883] sm:$0xff]
        %v885 = vld [vmem:[%s883 + $0x8] sm:$0xff]
        %v886 = vld [vmem:[%s883 + $0x10] sm:$0xff]
        %v887 = vld [vmem:[%s883 + $0x18] sm:$0xff]
        %v888 = vpack.c.bf16 %v862, %v860
        %v889 = vpack.c.bf16 %v863, %v861
        %v890 = vpack.c.bf16 %v866, %v864
        %v891 = vpack.c.bf16 %v867, %v865
        %v892 = vpack.c.bf16 %v870, %v868
        %v893 = vpack.c.bf16 %v871, %v869
        %v894 = vpack.c.bf16 %v874, %v872
        %v895 = vpack.c.bf16 %v875, %v873
        %897 = vset.pattern.permute.xlu0 0
        %898 = vperm.xlu0 %897, %v884
        %v899 = vpop.permute.xlu0 %898
        %902 = vset.pattern.permute.xlu0 0
        %903 = vperm.xlu0 %902, %v885
        %v904 = vpop.permute.xlu0 %903
        %907 = vset.pattern.permute.xlu0 0
        %908 = vperm.xlu0 %907, %v886
        %v909 = vpop.permute.xlu0 %908
        %912 = vset.pattern.permute.xlu0 0
        %913 = vperm.xlu0 %912, %v887
        %v914 = vpop.permute.xlu0 %913
        %v917 = vsel %vm569, %v881, 0
        %v920 = vsel %vm569, %v882, 0
        %922 = vmatpush.bf16.msra.mxu0 0
        %923 = vmatpush.bf16.msra.mxu0 0
        %924 = vmatpush.bf16.msra.mxu0 0
        %925 = vmatpush.bf16.msra.mxu0 0
        %926 = vmatpush.bf16.msra.mxu0 %v894
        %927 = vmatpush.bf16.msra.mxu0 %v892
        %928 = vmatpush.bf16.msra.mxu0 %v890
        %929 = vmatpush.bf16.msra.mxu0 %v888
        %930 = vmatmul.bf16.gmra.mxu0 %v917
        %v931 = vpop.f32.mrf.mxu0
        %v932 = vadd.f32 %v899, %v931
        %v933 = vpop.f32.mrf.mxu0
        %v934 = vadd.f32 %v904, %v933
        %935 = vmatmul.bf16.gmra.mxu0 %v920
        %v936 = vpop.f32.mrf.mxu0
        %v937 = vadd.f32 %v909, %v936
        %v938 = vpop.f32.mrf.mxu0
        %v939 = vadd.f32 %v914, %v938
        %940 = vdwg.mxu0
        %941 = vmatpush.bf16.msra.mxu0 0
        %942 = vmatpush.bf16.msra.mxu0 0
        %943 = vmatpush.bf16.msra.mxu0 0
        %944 = vmatpush.bf16.msra.mxu0 0
        %945 = vmatpush.bf16.msra.mxu0 %v895
        %946 = vmatpush.bf16.msra.mxu0 %v893
        %947 = vmatpush.bf16.msra.mxu0 %v891
        %948 = vmatpush.bf16.msra.mxu0 %v889
        %949 = vmatmul.bf16.gmra.mxu0 %v917
        %v950 = vpop.f32.mrf.mxu0
        %v951 = vadd.f32 %v899, %v950
        %v952 = vpop.f32.mrf.mxu0
        %v953 = vadd.f32 %v904, %v952
        %954 = vmatmul.bf16.gmra.mxu0 %v920
        %v955 = vpop.f32.mrf.mxu0
        %v956 = vadd.f32 %v909, %v955
        %v957 = vpop.f32.mrf.mxu0
        %v958 = vadd.f32 %v914, %v957
        %959 = vdwg.mxu0
        %v960 = vmax.f32 %v932, 0.0
        %v961 = vmax.f32 %v951, 0.0
        %v962 = vmax.f32 %v934, 0.0
        %v963 = vmax.f32 %v953, 0.0
        %v964 = vmax.f32 %v937, 0.0
        %v965 = vmax.f32 %v956, 0.0
        %v966 = vmax.f32 %v939, 0.0
        %v967 = vmax.f32 %v958, 0.0
        %s968 = scalar_lea.vmem %s1, 640
        %v969 = vld [vmem:[%s968] sm:$0xff]
        %v970 = vpack.c.bf16 %v969, %v969
        %s971 = scalar_lea.vmem %s2, 640
        %v972 = vld [vmem:[%s971] sm:$0xff]
        %v973 = vpack.c.bf16 %v962, %v960
        %v974 = vpack.c.bf16 %v963, %v961
        %v975 = vpack.c.bf16 %v966, %v964
        %v976 = vpack.c.bf16 %v967, %v965
        %978 = vset.pattern.permute.xlu0 0
        %979 = vperm.xlu0 %978, %v972
        %v980 = vpop.permute.xlu0 %979
        %v983 = vsel %vm352, %v970, 0
        %985 = vmatpush.bf16.msra.mxu0 0
        %986 = vmatpush.bf16.msra.mxu0 0
        %987 = vmatpush.bf16.msra.mxu0 0
        %988 = vmatpush.bf16.msra.mxu0 0
        %989 = vmatpush.bf16.msra.mxu0 0
        %990 = vmatpush.bf16.msra.mxu0 0
        %991 = vmatpush.bf16.msra.mxu0 %v975
        %992 = vmatpush.bf16.msra.mxu0 %v973
        %993 = vmatmul.bf16.gmra.mxu0 %v983
        %v994 = vpop.f32.mrf.mxu0
        %v995 = vadd.f32 %v980, %v994
        %v996 = vpop.f32.mrf.mxu0
        %997 = vdwg.mxu0
        %998 = vmatpush.bf16.msra.mxu0 0
        %999 = vmatpush.bf16.msra.mxu0 0
        %1000 = vmatpush.bf16.msra.mxu0 0
        %1001 = vmatpush.bf16.msra.mxu0 0
        %1002 = vmatpush.bf16.msra.mxu0 0
        %1003 = vmatpush.bf16.msra.mxu0 0
        %1004 = vmatpush.bf16.msra.mxu0 %v976
        %1005 = vmatpush.bf16.msra.mxu0 %v974
        %1006 = vmatmul.bf16.gmra.mxu0 %v983
        %v1007 = vpop.f32.mrf.mxu0
        %v1008 = vadd.f32 %v980, %v1007
        %v1009 = vpop.f32.mrf.mxu0
        %1010 = vdwg.mxu0
        %v1011 = vmax.f32 %v995, 0.0
        %v1012 = vmax.f32 %v1008, 0.0
        %s1013 = scalar_lea.vmem %s1, 768
        %v1014 = vld [vmem:[%s1013] sm:$0xff]
        %s1015 = scalar_lea.vmem %s2, 768
        %v1016 = vld [vmem:[%s1015] sm:$0x1]
        %1018 = vset.pattern.permute.xlu0 0
        %1019 = vperm.xlu0 %1018, %v1014
        %v1020 = vpop.permute.xlu0 %1019
        %v1022 = vmul.f32 %v1011, %v1020
        %v1023 = vmul.f32 %v1012, %v1020
        %v1024 = vrot.slane %v1022, 4
        %v1025 = vadd.f32 %v1022, %v1024
        %v1026 = vrot.slane %v1025, 2
        %v1027 = vadd.f32 %v1025, %v1026
        %v1028 = vrot.slane %v1027, 1
        %v1029 = vadd.f32 %v1027, %v1028
        %v1030 = vrot.slane %v1023, 4
        %v1031 = vadd.f32 %v1023, %v1030
        %v1032 = vrot.slane %v1031, 2
        %v1033 = vadd.f32 %v1031, %v1032
        %v1034 = vrot.slane %v1033, 1
        %v1035 = vadd.f32 %v1033, %v1034
        %1037 = vset.pattern.permute.xlu0 0
        %1038 = vperm.xlu0 %1037, %v1016
        %v1039 = vpop.permute.xlu0 %1038
        %v1041 = vadd.f32 %v1029, %v1039
        %v1042 = vadd.f32 %v1035, %v1039
        %v1045 = vrot.slane %v1042, 7
        %vm1046 = vcmask 1040384
        %v1047 = vsel %vm1046, %v1041, %v1045
        %v1049 = vlaneseq
        %vm1050 = vcmp.ge.s32.totalorder %v1049, 0
        %vm1051 = vcmp.lt.s32.totalorder %v1049, 256
        %vm1052 = vmand %vm1050, %vm1051
        %1053 = vst.msk [vmem:[%s188] sm:$0x3] %vm1052, %v1047
        %s1054 = sand.u32 %s96, 1
        %s1055 = scalar_lea.sflag [#allocation4], %s1054
        %s1056 = sand.u32 %s96, 1
        %s1057 = smul.addr %s1056, 2
        %s1058 = scalar_lea.vmem [#allocation5], %s1057
        // Predicated region
        $region37: #{tpu_custom_call.1} parent=31 // pred_check
          %p1059 = pneg %p106
        $region38: #{tpu_custom_call.1} parent=31 // pred_check_branch
          %1061 = sbr.rel (%p1059) target = $region40
        $region39: #{tpu_custom_call.1} parent=31 // pred_region
          %s1062 = smul.u32 2, %s20
          %1064 = vsyncadd %s1055, 0
          %s1065 = scalar_lea.hbm %s3, %s1062
          %s1067 = sshll.u32 %s1058, 4
          %s1068 = int_to_ptr.vmem [resolvable:$true] %s1067
          %s1069 = sshll.u32 %s1065, 4
          %s1070 = int_to_ptr.hbm [resolvable:$true] %s1069
          %1072 = dma.vmem_to_hbm [thread:$0]  %s1068, 32, %s1070, %s1055
        $region40: #{tpu_custom_call.1} parent=31 // pred_fallthru
          _
      $region32: #{tpu_custom_call.1} parent=5 // pred_fallthru
        _
      %p1073 = scmp.le.s32.totalorder 2, %s15
      // Predicated region
      $region41: #{tpu_custom_call.1} parent=5 // pred_check
        %p1074 = pneg %p1073
      $region42: #{tpu_custom_call.1} parent=5 // pred_check_branch
        %1076 = sbr.rel (%p1074) target = $region44
      $region43: #{tpu_custom_call.1} parent=5 // pred_region
        %s1077 = ssub.s32 %s15, 2
        // Predicated region
        $region45: #{tpu_custom_call.1} parent=43 // pred_check
          %p1078 = pneg %p112
        $region46: #{tpu_custom_call.1} parent=43 // pred_check_branch
          %1080 = sbr.rel (%p1078) target = $region48
        $region47: #{tpu_custom_call.1} parent=43 // pred_region
          %s1081 = sand.u32 %s97, 1
          %s1082 = scalar_lea.sflag [#allocation4], %s1081
          %s1083 = sand.u32 %s97, 1
          %s1084 = smul.addr %s1083, 2
          %s1085 = scalar_lea.vmem [#allocation5], %s1084
          %1087 = dma.done %s1082, 32
        $region48: #{tpu_custom_call.1} parent=43 // pred_fallthru
          _
      $region44: #{tpu_custom_call.1} parent=5 // pred_fallthru
        _
    $region6: #{tpu_custom_call.1} parent=1 // loop_footer
      %s19 = sadd.s32 1, %s15
    $region7: #{tpu_custom_call.1} parent=1 // loop_footer_branch
      %14 = sbr.rel target = $region3
    $region8: #{tpu_custom_call.1} parent=1 // loop_exit
      _
    %1088 = vsyncpa [#allocation3], 1
    %s1089 = scalar_lea.sflag [#allocation3], 1
    %1090 = vsyncpa %s1089, 1
    %1091 = vsyncpa [#allocation4], 1
    %s1092 = scalar_lea.sflag [#allocation4], 1
    %1093 = vsyncpa %s1092, 1

</llo_original>
